<compile_context>
chip_gen: v7x
topology: tpu7x:2x2x1
jax: 0.10.0
libtpu: 0.0.40
codegen_flags: <defaults>
</compile_context>

<pallas_src>
import functools

import jax
import jax.numpy as jnp
from jax.experimental import pallas as pl
from jax.experimental.pallas import tpu as pltpu


def _mhca_kernel(x_ref, y_ref, wk_ref, wv_ref, wq_ref, wo_ref, bo_ref, o_ref, acc_ref,
                 *, bt, n, m, compute_dtype):
    """Grid = (batch_tiles, heads).  One (batch tile, head) pair per step.

    x_ref  : (bt*n, dim)        rows for keys/values (f32, resident across heads)
    y_ref  : (bt*m, dim)        rows for queries     (f32, resident across heads)
    wk_ref : (dim, dim_head)    this head's K weight (bf16)
    wv_ref : (dim, dim_head)    this head's V weight (bf16)
    wq_ref : (dim, dim_head)    this head's Q weight, pre-scaled by dim_head**-0.5 (bf16)
    wo_ref : (dim_head, dim)    this head's slice of to_out[0].weight.T (bf16)
    bo_ref : (1, dim)           to_out[0].bias (f32)
    o_ref  : (bt*m, dim)        output block (written on the last head)
    acc_ref: (bt*m, dim) f32    VMEM accumulator, resident across the heads axis
    """
    h = pl.program_id(1)

    @pl.when(h == 0)
    def _init():
        acc_ref[...] = jnp.zeros_like(acc_ref)

    x = x_ref[...].astype(compute_dtype)            # (bt*n, dim)
    y = y_ref[...].astype(compute_dtype)            # (bt*m, dim)

    # Per-head projections; head selection is done by the BlockSpec index_map (free
    # DMA addressing), so there is no in-kernel lane slicing / relayout.
    k = jnp.dot(x, wk_ref[...], preferred_element_type=jnp.float32)   # (bt*n, d)
    v = jnp.dot(x, wv_ref[...], preferred_element_type=jnp.float32)   # (bt*n, d)
    q = jnp.dot(y, wq_ref[...], preferred_element_type=jnp.float32)   # (bt*m, d), scale folded

    d = q.shape[-1]
    # Leading-dim-only reshapes (no lane/sublane movement).
    qh = q.astype(compute_dtype).reshape(bt, m, d)
    kh = k.astype(compute_dtype).reshape(bt, n, d)
    vh = v.astype(compute_dtype).reshape(bt, n, d)

    # Batched (over the batch tile) attention for this head; scores/softmax in f32.
    dots = jnp.einsum('bqd,bkd->bqk', qh, kh,
                      preferred_element_type=jnp.float32)              # (bt, m, n)
    dots = dots - jnp.max(dots, axis=-1, keepdims=True)                # stable softmax
    e = jnp.exp(dots)
    p = e * pl.reciprocal(jnp.sum(e, axis=-1, keepdims=True), approx=True)
    # TODO(synk): dropout on attn / output (p=dropout) skipped — identity in eval mode.

    ctx = jnp.einsum('bqk,bkd->bqd', p.astype(compute_dtype), vh,
                     preferred_element_type=jnp.float32)               # (bt, m, d)

    # Per-head output projection, accumulated into f32 scratch (no head-merge concat).
    acc_ref[...] += jnp.dot(ctx.reshape(bt * m, d).astype(compute_dtype), wo_ref[...],
                            preferred_element_type=jnp.float32)

    @pl.when(h == pl.num_programs(1) - 1)
    def _finalize():
        o_ref[...] = (acc_ref[...] + bo_ref[...]).astype(o_ref.dtype)


def _pick_batch_tile(B, n, m, dim, dim_head, act_bytes, wgt_bytes, budget_bytes):
    """Byte-budgeted, sublane-aligned batch tile; prefers >= 2 batch grid steps."""
    def aligned(bt):
        # f32 activation blocks need (bt*seq) % 8 == 0 unless the block spans the array.
        return bt == B or (((bt * n) % 8 == 0) and ((bt * m) % 8 == 0))

    def fits(bt):
        rx, ry = bt * n, bt * m
        act = 2 * (rx + 2 * ry) * dim * act_bytes                  # x, y, out blocks (double-buffered)
        interm = 4 * (2 * rx * dim_head + 2 * ry * dim_head       # k, v, q, ctx (f32)
                      + bt * m * n                                 # scores (f32)
                      + ry * dim)                                  # accumulator (f32)
        wgt = 2 * (3 * dim * dim_head + dim_head * dim + dim) * wgt_bytes
        return act + interm + wgt <= budget_bytes

    divisors = [d for d in range(1, B + 1) if B % d == 0 and aligned(d)]
    good = [d for d in divisors if fits(d)]
    pref = [d for d in good if B // d >= 2]        # keep megacore / pipeline overlap alive
    if pref:
        return max(pref)
    if good:
        return max(good)
    return min(divisors) if divisors else B


def mhca_forward(x, y, w_qkv1, w_qkv2, w_out, b_out, *, heads, dim_head,
                 batch_tile=None, compute_dtype=jnp.bfloat16,
                 vmem_limit_bytes=32 * 1024 * 1024):
    """x: (B, n, dim), y: (B, m, dim). Weights are PyTorch-convention (out, in)."""
    B, n, dim = x.shape
    _, m, _ = y.shape
    inner = heads * dim_head
    scale = dim_head ** (-0.5)

    # ---- wrapper-side weight prep (pruned projections, per-head blocks) -------------
    # to_qkv weight rows are [Q | K | V]; x only needs K,V and y only needs Q.
    wk = w_qkv1[inner:2 * inner, :]                     # (inner, dim)
    wv = w_qkv1[2 * inner:3 * inner, :]                 # (inner, dim)
    wq = w_qkv2[:inner, :] * scale                      # (inner, dim), scale folded

    def per_head_t(w):                                  # (inner, dim) -> (heads, dim, dim_head)
        return jnp.transpose(w.reshape(heads, dim_head, dim), (0, 2, 1))

    wk3 = per_head_t(wk).astype(compute_dtype)
    wv3 = per_head_t(wv).astype(compute_dtype)
    wq3 = per_head_t(wq).astype(compute_dtype)
    wo3 = jnp.transpose(w_out).reshape(heads, dim_head, dim).astype(compute_dtype)
    bo = b_out.reshape(1, dim).astype(jnp.float32)

    # ---- batch tiling ----------------------------------------------------------------
    if batch_tile is None:
        batch_tile = _pick_batch_tile(B, n, m, dim, dim_head,
                                      act_bytes=4,
                                      wgt_bytes=jnp.dtype(compute_dtype).itemsize,
                                      budget_bytes=int(0.6 * vmem_limit_bytes))
    bt = batch_tile
    assert B % bt == 0, "batch_tile must divide B"

    # Activations / outputs presented as dense 2-D row slabs (lane-dense block stores).
    x2 = x.reshape(B * n, dim)
    y2 = y.reshape(B * m, dim)

    kernel = functools.partial(_mhca_kernel, bt=bt, n=n, m=m, compute_dtype=compute_dtype)

    out2 = pl.pallas_call(
        kernel,
        out_shape=jax.ShapeDtypeStruct((B * m, dim), jnp.float32),
        grid=(B // bt, heads),
        in_specs=[
            pl.BlockSpec((bt * n, dim), lambda b, h: (b, 0)),            # x rows (resident over h)
            pl.BlockSpec((bt * m, dim), lambda b, h: (b, 0)),            # y rows (resident over h)
            pl.BlockSpec((None, dim, dim_head), lambda b, h: (h, 0, 0)),  # wk, per-head block
            pl.BlockSpec((None, dim, dim_head), lambda b, h: (h, 0, 0)),  # wv
            pl.BlockSpec((None, dim, dim_head), lambda b, h: (h, 0, 0)),  # wq (scaled)
            pl.BlockSpec((None, dim_head, dim), lambda b, h: (h, 0, 0)),  # wo, per-head block
            pl.BlockSpec((1, dim), lambda b, h: (0, 0)),                  # bias
        ],
        out_specs=pl.BlockSpec((bt * m, dim), lambda b, h: (b, 0)),
        scratch_shapes=[pltpu.VMEM((bt * m, dim), jnp.float32)],
        compiler_params=pltpu.CompilerParams(
            dimension_semantics=("parallel", "arbitrary"),
            vmem_limit_bytes=vmem_limit_bytes),
    )(x2, y2, wk3, wv3, wq3, wo3, bo)

    return out2.reshape(B, m, dim)


def mhca_reference(x, y, w_qkv1, w_qkv2, w_out, b_out, *, heads, dim_head):
    """Pure-JAX (f32) reference mirroring the PyTorch forward (eval mode)."""
    B, n, dim = x.shape
    _, m, _ = y.shape
    inner = heads * dim_head
    scale = dim_head ** (-0.5)

    qkv1 = x @ w_qkv1.T
    qkv2 = y @ w_qkv2.T
    _, k1, v1 = jnp.split(qkv1, 3, axis=-1)
    q2, _, _ = jnp.split(qkv2, 3, axis=-1)

    def split_heads(t, seq):
        return t.reshape(B, seq, heads, dim_head).transpose(0, 2, 1, 3)

    k1 = split_heads(k1, n)
    v1 = split_heads(v1, n)
    q2 = split_heads(q2, m)

    dots = jnp.einsum('bhmd,bhnd->bhmn', q2, k1) * scale
    attn = jax.nn.softmax(dots, axis=-1)
    out = jnp.einsum('bhmn,bhnd->bhmd', attn, v1)
    out = out.transpose(0, 2, 1, 3).reshape(B, m, inner)
    return out @ w_out.T + b_out


if __name__ == "__main__":
    # Small deterministic setup consistent with the module's forward.
    B, n, m, dim = 2, 8, 8, 32
    heads, dim_head = 2, 16
    inner = heads * dim_head

    key = jax.random.PRNGKey(0)
    kx, ky, k1, k2, k3, k4 = jax.random.split(key, 6)

    x = jax.random.normal(kx, (B, n, dim), dtype=jnp.float32)
    y = jax.random.normal(ky, (B, m, dim), dtype=jnp.float32)

    # Parameters (PyTorch nn.Linear convention: weight is (out_features, in_features)).
    w_qkv1 = 0.05 * jax.random.normal(k1, (inner * 3, dim), dtype=jnp.float32)
    w_qkv2 = 0.05 * jax.random.normal(k2, (inner * 3, dim), dtype=jnp.float32)
    w_out = 0.05 * jax.random.normal(k3, (dim, inner), dtype=jnp.float32)
    b_out = 0.05 * jax.random.normal(k4, (dim,), dtype=jnp.float32)

    out = mhca_forward(x, y, w_qkv1, w_qkv2, w_out, b_out,
                       heads=heads, dim_head=dim_head)
    out = jax.block_until_ready(out)

    ref = mhca_reference(x, y, w_qkv1, w_qkv2, w_out, b_out,
                         heads=heads, dim_head=dim_head)
    assert out.shape == (B, m, dim)
    # bf16 matmul operands + approx reciprocal => loosened tolerance vs the f32 reference.
    assert jnp.allclose(out, ref, atol=2e-2, rtol=2e-2), "mismatch vs JAX reference"

    print("KERNEL_OK")
</pallas_src>

<mosaic_0001>
module attributes {stable_mosaic.version = 11 : i64} {
  func.func @_mhca_kernel(%arg0: i32, %arg1: i32, %arg2: memref<8x32xf32, #tpu.memory_space<vmem>>, %arg3: memref<8x32xf32, #tpu.memory_space<vmem>>, %arg4: memref<1x32x16xbf16, #tpu.memory_space<vmem>>, %arg5: memref<1x32x16xbf16, #tpu.memory_space<vmem>>, %arg6: memref<1x32x16xbf16, #tpu.memory_space<vmem>>, %arg7: memref<1x16x32xbf16, #tpu.memory_space<vmem>>, %arg8: memref<1x32xf32, #tpu.memory_space<vmem>>, %arg9: memref<8x32xf32, #tpu.memory_space<vmem>>, %arg10: memref<8x32xf32, #tpu.memory_space<vmem>>) attributes {dimension_semantics = [#tpu.dimension_semantics<parallel>, #tpu.dimension_semantics<arbitrary>], iteration_bounds = array<i64: 2, 2>, scalar_prefetch = 0 : i64, scratch_operands = 1 : i64, tpu.core_type = #tpu.core_type<tc>, window_params = [{transform_indices = @transform_0, window_bounds = array<i64: 8, 32>}, {transform_indices = @transform_1, window_bounds = array<i64: 8, 32>}, {transform_indices = @transform_2, window_bounds = array<i64: 1, 32, 16>}, {transform_indices = @transform_3, window_bounds = array<i64: 1, 32, 16>}, {transform_indices = @transform_4, window_bounds = array<i64: 1, 32, 16>}, {transform_indices = @transform_5, window_bounds = array<i64: 1, 16, 32>}, {pipeline_mode = #tpu.pipeline_mode<synchronous>, transform_indices = @transform_6, window_bounds = array<i64: 1, 32>}, {transform_indices = @transform_7, window_bounds = array<i64: 8, 32>}]} {
    %c0_i32 = arith.constant 0 : i32
    %0 = arith.cmpi eq, %arg1, %c0_i32 : i32
    %1 = arith.extui %0 : i1 to i32
    %c0_i32_0 = arith.constant 0 : i32
    %2 = arith.cmpi ne, %1, %c0_i32_0 : i32
    scf.if %2 {
      %cst_28 = arith.constant 0.000000e+00 : f32
      %46 = vector.broadcast %cst_28 : f32 to vector<8x32xf32>
      %c0_29 = arith.constant 0 : index
      %c0_30 = arith.constant 0 : index
      %47 = vector.load %arg10[%c0_29, %c0_30] : memref<8x32xf32, #tpu.memory_space<vmem>>, vector<8x32xf32>
      tpu.vector_store %arg10[%c0_29, %c0_30], %46 {strides = array<i32>} : memref<8x32xf32, #tpu.memory_space<vmem>>, vector<8x32xf32>,
    } else {
    }
    %c0 = arith.constant 0 : index
    %c0_1 = arith.constant 0 : index
    %3 = vector.load %arg2[%c0, %c0_1] : memref<8x32xf32, #tpu.memory_space<vmem>>, vector<8x32xf32>
    %4 = arith.truncf %3 : vector<8x32xf32> to vector<8x32xbf16>
    %c0_2 = arith.constant 0 : index
    %c0_3 = arith.constant 0 : index
    %5 = vector.load %arg3[%c0_2, %c0_3] : memref<8x32xf32, #tpu.memory_space<vmem>>, vector<8x32xf32>
    %6 = arith.truncf %5 : vector<8x32xf32> to vector<8x32xbf16>
    %c0_4 = arith.constant 0 : index
    %c0_5 = arith.constant 0 : index
    %c0_6 = arith.constant 0 : index
    %7 = vector.load %arg4[%c0_4, %c0_5, %c0_6] : memref<1x32x16xbf16, #tpu.memory_space<vmem>>, vector<1x32x16xbf16>
    %8 = vector.shape_cast %7 : vector<1x32x16xbf16> to vector<32x16xbf16>
    %cst = arith.constant dense<0.000000e+00> : vector<8x16xf32>
    %9 = tpu.matmul %4, %8, %cst {dimension_numbers = #tpu.dot_dimension_numbers<[1], [0], [0], [1], [0, 0, 1, 1], [], []>} : vector<8x32xbf16>, vector<32x16xbf16>, vector<8x16xf32> -> vector<8x16xf32>
    %c0_7 = arith.constant 0 : index
    %c0_8 = arith.constant 0 : index
    %c0_9 = arith.constant 0 : index
    %10 = vector.load %arg5[%c0_7, %c0_8, %c0_9] : memref<1x32x16xbf16, #tpu.memory_space<vmem>>, vector<1x32x16xbf16>
    %11 = vector.shape_cast %10 : vector<1x32x16xbf16> to vector<32x16xbf16>
    %cst_10 = arith.constant dense<0.000000e+00> : vector<8x16xf32>
    %12 = tpu.matmul %4, %11, %cst_10 {dimension_numbers = #tpu.dot_dimension_numbers<[1], [0], [0], [1], [0, 0, 1, 1], [], []>} : vector<8x32xbf16>, vector<32x16xbf16>, vector<8x16xf32> -> vector<8x16xf32>
    %c0_11 = arith.constant 0 : index
    %c0_12 = arith.constant 0 : index
    %c0_13 = arith.constant 0 : index
    %13 = vector.load %arg6[%c0_11, %c0_12, %c0_13] : memref<1x32x16xbf16, #tpu.memory_space<vmem>>, vector<1x32x16xbf16>
    %14 = vector.shape_cast %13 : vector<1x32x16xbf16> to vector<32x16xbf16>
    %cst_14 = arith.constant dense<0.000000e+00> : vector<8x16xf32>
    %15 = tpu.matmul %6, %14, %cst_14 {dimension_numbers = #tpu.dot_dimension_numbers<[1], [0], [0], [1], [0, 0, 1, 1], [], []>} : vector<8x32xbf16>, vector<32x16xbf16>, vector<8x16xf32> -> vector<8x16xf32>
    %16 = arith.truncf %15 : vector<8x16xf32> to vector<8x16xbf16>
    %17 = vector.shape_cast %16 : vector<8x16xbf16> to vector<1x8x16xbf16>
    %18 = arith.truncf %9 : vector<8x16xf32> to vector<8x16xbf16>
    %19 = vector.shape_cast %18 : vector<8x16xbf16> to vector<1x8x16xbf16>
    %20 = arith.truncf %12 : vector<8x16xf32> to vector<8x16xbf16>
    %21 = vector.shape_cast %20 : vector<8x16xbf16> to vector<1x8x16xbf16>
    "tpu.trace_start"() <{level = 10 : i32, message = "bqd,bkd->bqk"}> : () -> ()
    %cst_15 = arith.constant dense<0.000000e+00> : vector<1x8x8xf32>
    %22 = tpu.matmul %17, %19, %cst_15 {dimension_numbers = #tpu.dot_dimension_numbers<[2], [2], [1], [1], [0, 0, 0, 1, 1, 1], [0], [0]>} : vector<1x8x16xbf16>, vector<1x8x16xbf16>, vector<1x8x8xf32> -> vector<1x8x8xf32>
    "tpu.trace_stop"() : () -> ()
    %cst_16 = arith.constant dense<0xFF800000> : vector<1x8xf32>
    %23 = vector.multi_reduction <maximumf>, %22, %cst_16 [2] : vector<1x8x8xf32> to vector<1x8xf32>
    %24 = vector.shape_cast %23 : vector<1x8xf32> to vector<1x8x1xf32>
    %25 = vector.broadcast %24 : vector<1x8x1xf32> to vector<1x8x8xf32>
    %26 = arith.subf %22, %25 : vector<1x8x8xf32>
    %27 = math.exp %26 : vector<1x8x8xf32>
    %cst_17 = arith.constant dense<0.000000e+00> : vector<1x8xf32>
    %28 = vector.multi_reduction <add>, %27, %cst_17 [2] : vector<1x8x8xf32> to vector<1x8xf32>
    %29 = vector.shape_cast %28 : vector<1x8xf32> to vector<1x8x1xf32>
    %30 = tpu.reciprocal %29 {approx = true} : vector<1x8x1xf32> -> vector<1x8x1xf32>
    %31 = vector.broadcast %30 : vector<1x8x1xf32> to vector<1x8x8xf32>
    %32 = arith.mulf %27, %31 : vector<1x8x8xf32>
    %33 = arith.truncf %32 : vector<1x8x8xf32> to vector<1x8x8xbf16>
    "tpu.trace_start"() <{level = 10 : i32, message = "bqk,bkd->bqd"}> : () -> ()
    %cst_18 = arith.constant dense<0.000000e+00> : vector<1x8x16xf32>
    %34 = tpu.matmul %33, %21, %cst_18 {dimension_numbers = #tpu.dot_dimension_numbers<[2], [1], [1], [2], [0, 0, 0, 1, 1, 2], [0], [0]>} : vector<1x8x8xbf16>, vector<1x8x16xbf16>, vector<1x8x16xf32> -> vector<1x8x16xf32>
    "tpu.trace_stop"() : () -> ()
    %c0_19 = arith.constant 0 : index
    %c0_20 = arith.constant 0 : index
    %35 = vector.load %arg10[%c0_19, %c0_20] : memref<8x32xf32, #tpu.memory_space<vmem>>, vector<8x32xf32>
    %36 = vector.shape_cast %34 : vector<1x8x16xf32> to vector<8x16xf32>
    %37 = arith.truncf %36 : vector<8x16xf32> to vector<8x16xbf16>
    %c0_21 = arith.constant 0 : index
    %c0_22 = arith.constant 0 : index
    %c0_23 = arith.constant 0 : index
    %38 = vector.load %arg7[%c0_21, %c0_22, %c0_23] : memref<1x16x32xbf16, #tpu.memory_space<vmem>>, vector<1x16x32xbf16>
    %39 = vector.shape_cast %38 : vector<1x16x32xbf16> to vector<16x32xbf16>
    %cst_24 = arith.constant dense<0.000000e+00> : vector<8x32xf32>
    %40 = tpu.matmul %37, %39, %cst_24 {dimension_numbers = #tpu.dot_dimension_numbers<[1], [0], [0], [1], [0, 0, 1, 1], [], []>} : vector<8x16xbf16>, vector<16x32xbf16>, vector<8x32xf32> -> vector<8x32xf32>
    %41 = arith.addf %35, %40 : vector<8x32xf32>
    %c0_25 = arith.constant 0 : index
    %c0_26 = arith.constant 0 : index
    %42 = vector.load %arg10[%c0_25, %c0_26] : memref<8x32xf32, #tpu.memory_space<vmem>>, vector<8x32xf32>
    tpu.vector_store %arg10[%c0_25, %c0_26], %41 {strides = array<i32>} : memref<8x32xf32, #tpu.memory_space<vmem>>, vector<8x32xf32>,
    %c1_i32 = arith.constant 1 : i32
    %43 = arith.cmpi eq, %arg1, %c1_i32 : i32
    %44 = arith.extui %43 : i1 to i32
    %c0_i32_27 = arith.constant 0 : i32
    %45 = arith.cmpi ne, %44, %c0_i32_27 : i32
    scf.if %45 {
      %c0_28 = arith.constant 0 : index
      %c0_29 = arith.constant 0 : index
      %46 = vector.load %arg10[%c0_28, %c0_29] : memref<8x32xf32, #tpu.memory_space<vmem>>, vector<8x32xf32>
      %c0_30 = arith.constant 0 : index
      %c0_31 = arith.constant 0 : index
      %47 = vector.load %arg8[%c0_30, %c0_31] : memref<1x32xf32, #tpu.memory_space<vmem>>, vector<1x32xf32>
      %48 = vector.broadcast %47 : vector<1x32xf32> to vector<8x32xf32>
      %49 = arith.addf %46, %48 : vector<8x32xf32>
      %c0_32 = arith.constant 0 : index
      %c0_33 = arith.constant 0 : index
      %50 = vector.load %arg9[%c0_32, %c0_33] : memref<8x32xf32, #tpu.memory_space<vmem>>, vector<8x32xf32>
      tpu.vector_store %arg9[%c0_32, %c0_33], %49 {strides = array<i32>} : memref<8x32xf32, #tpu.memory_space<vmem>>, vector<8x32xf32>,
    } else {
    }
    return
  }
  func.func @transform_0(%arg0: i32, %arg1: i32) -> (i32, i32) {
    %c0_i32 = arith.constant 0 : i32
    %c0_i32_0 = arith.constant 0 : i32
    return %arg0, %c0_i32 : i32, i32
  }
  func.func @transform_1(%arg0: i32, %arg1: i32) -> (i32, i32) {
    %c0_i32 = arith.constant 0 : i32
    %c0_i32_0 = arith.constant 0 : i32
    return %arg0, %c0_i32 : i32, i32
  }
  func.func @transform_2(%arg0: i32, %arg1: i32) -> (i32, i32, i32) {
    %c0_i32 = arith.constant 0 : i32
    %c0_i32_0 = arith.constant 0 : i32
    %c0_i32_1 = arith.constant 0 : i32
    return %arg1, %c0_i32, %c0_i32_0 : i32, i32, i32
  }
  func.func @transform_3(%arg0: i32, %arg1: i32) -> (i32, i32, i32) {
    %c0_i32 = arith.constant 0 : i32
    %c0_i32_0 = arith.constant 0 : i32
    %c0_i32_1 = arith.constant 0 : i32
    return %arg1, %c0_i32, %c0_i32_0 : i32, i32, i32
  }
  func.func @transform_4(%arg0: i32, %arg1: i32) -> (i32, i32, i32) {
    %c0_i32 = arith.constant 0 : i32
    %c0_i32_0 = arith.constant 0 : i32
    %c0_i32_1 = arith.constant 0 : i32
    return %arg1, %c0_i32, %c0_i32_0 : i32, i32, i32
  }
  func.func @transform_5(%arg0: i32, %arg1: i32) -> (i32, i32, i32) {
    %c0_i32 = arith.constant 0 : i32
    %c0_i32_0 = arith.constant 0 : i32
    %c0_i32_1 = arith.constant 0 : i32
    return %arg1, %c0_i32, %c0_i32_0 : i32, i32, i32
  }
  func.func @transform_6(%arg0: i32, %arg1: i32) -> (i32, i32) {
    %c0_i32 = arith.constant 0 : i32
    %c0_i32_0 = arith.constant 0 : i32
    %c0_i32_1 = arith.constant 0 : i32
    return %c0_i32, %c0_i32_0 : i32, i32
  }
  func.func @transform_7(%arg0: i32, %arg1: i32) -> (i32, i32) {
    %c0_i32 = arith.constant 0 : i32
    %c0_i32_0 = arith.constant 0 : i32
    return %arg0, %c0_i32 : i32, i32
  }
}

</mosaic_0001>

<llo_original>
// kernel: tpu_custom_call.1
$region0: #{tpu_custom_call.1}
  #allocation0 [shape = 'u32[]', space=smem, size = 0x4, offset = 0x4, fixed_abs, tag = 'smem constant byte address 0x4 - core index']
  #allocation1 [shape = 'u32[144,128]{1,0:T(1,128)}', space=vmem, size = 0x12000, scoped, tag = 'internal scratch']
  #allocation2 [shape = 'f32[8,32]{1,0:T(8,128)}', space=vmem, size = 0x1000, scoped, tag = 'scratch operand']
  %s0 = inlined_call_operand.vmem [shape: f32[16,32], index: 0, kind: input, shape index: {}]
  %s1 = inlined_call_operand.vmem [shape: f32[16,32], index: 1, kind: input, shape index: {}]
  %s2 = inlined_call_operand.vmem [shape: bf16[2,32,16], index: 2, kind: input, shape index: {}]
  %s3 = inlined_call_operand.vmem [shape: bf16[2,32,16], index: 3, kind: input, shape index: {}]
  %s4 = inlined_call_operand.vmem [shape: bf16[2,32,16], index: 4, kind: input, shape index: {}]
  %s5 = inlined_call_operand.vmem [shape: bf16[2,16,32], index: 5, kind: input, shape index: {}]
  %s6 = inlined_call_operand.vmem [shape: f32[1,32], index: 6, kind: input, shape index: {}]
  %s7 = inlined_call_operand.hbm [shape: f32[16,32], index: 7, kind: output, shape index: {}]
  %s8 = sld [smem:[#allocation0]]
  $region69: #{tpu_custom_call.1} parent=0
    _
  %s10 = ssub.s32 1, %s8
  %s11 = scalar_select 0, %s10, %s8
  $region1: #{tpu_custom_call.1} parent=0
    #allocation3 [shape = 'u8[8192]{0}', space=vmem, size = 0x2000, scoped, tag = 'output window, operand 0']
    #allocation4 [shape = 's32[2]{0}', space=sflag, size = 0x8, scoped, tag = 'scoped memory for tpu_custom_call.1']
    %12 = vsyncpa [#allocation4], 0
    %s13 = scalar_lea.sflag [#allocation4], 1
    %14 = vsyncpa %s13, 0
    loop: start=0, step=1, limit=6
    $region2: #{tpu_custom_call.1} parent=1 // loop_pre_header
      _
    $region3: #{tpu_custom_call.1} parent=1 // loop_header
      %s16 = sphi 0, %s20
      %p17 = scmp.ge.s32.totalorder %s16, 6
      %s23 = sphi 0, %s35
      %s24 = sphi 0, %s31
      %s25 = sphi 0, %s23
      %s26 = sphi 0, %s24
      %s27 = sphi 0, %s25
      %s28 = sphi 0, %s26
      %s38 = sphi 0, %s40
      %s41 = sphi 0, %s38
      %s42 = sphi 0, %s41
      %s58 = sphi 0, %s42
      %s64 = sphi 0, %s66
      %s67 = sphi 0, %s64
      %s68 = sphi 0, %s67
      %s84 = sphi 0, %s68
      %s90 = sphi 0, %s92
      %s93 = sphi 0, %s90
      %s94 = sphi 0, %s93
      %s110 = sphi 0, %s94
      %s116 = sphi 0, %s118
      %s119 = sphi 0, %s116
      %s120 = sphi 0, %s119
      %s136 = sphi 0, %s120
      %s142 = sphi 0, %s144
      %s145 = sphi 0, %s142
      %s146 = sphi 0, %s145
      %s162 = sphi 0, %s146
      %s168 = sphi 0, %s170
      %s171 = sphi 0, %s168
      %s172 = sphi 0, %s171
      %s188 = sphi 0, %s172
      %s192 = sphi 0, %s192
      %s194 = sphi 0, %s192
      %s195 = sphi 0, %s194
      %s209 = sphi 0, %s195
      %s215 = sphi 0, %s217
      %s218 = sphi 0, %s215
      %s219 = sphi 0, %s218
      %s235 = sphi 0, %s219
    $region4: #{tpu_custom_call.1} parent=1 // loop_header_branch
      %19 = sbr.rel (%p17) target = $region8
    $region5: #{tpu_custom_call.1} parent=1 // loop_body
      %s21 = ssub.s32 %s16, 1
      %s22 = ssub.s32 %s16, 2
      %s29 = sadd.s32 1, %s24
      %p30 = scmp.ge.s32.totalorder %s29, 2
      %s31 = scalar_select %p30, 0, %s29
      %s32 = sadd.s32 1, %s23
      %s33 = scalar_select %p30, %s32, %s23
      %p34 = scmp.ge.s32.totalorder %s33, 2
      %s35 = scalar_select %p34, 0, %s33
      %s36 = ssub.s32 %s23, %s35
      %p37 = scmp.eq.s32.totalorder %s36, 0
      %s39 = sadd.s32 %s38, 1
      %s40 = scalar_select %p37, %s38, %s39
      %p43 = pneg %p37
      %p44 = scmp.eq.s32.totalorder %s16, 3
      %p45 = por %p43, %p44
      %p46 = scmp.ne.s32.totalorder %s38, %s41
      %p47 = scmp.eq.s32.totalorder %s16, 0
      %p48 = por %p46, %p47
      %p49 = scmp.ne.s32.totalorder %s38, %s41
      %p50 = scmp.eq.s32.totalorder %s21, 3
      %p51 = por %p49, %p50
      %p52 = scmp.ne.s32.totalorder %s41, %s42
      %p53 = scmp.eq.s32.totalorder %s21, 0
      %p54 = por %p52, %p53
      %p55 = scmp.ne.s32.totalorder %s41, %s42
      %p56 = scmp.eq.s32.totalorder %s22, 3
      %p57 = por %p55, %p56
      %p59 = scmp.ne.s32.totalorder %s42, %s58
      %p60 = scmp.eq.s32.totalorder %s22, 0
      %p61 = por %p59, %p60
      %s62 = ssub.s32 %s23, %s35
      %p63 = scmp.eq.s32.totalorder %s62, 0
      %s65 = sadd.s32 %s64, 1
      %s66 = scalar_select %p63, %s64, %s65
      %p69 = pneg %p63
      %p70 = scmp.eq.s32.totalorder %s16, 3
      %p71 = por %p69, %p70
      %p72 = scmp.ne.s32.totalorder %s64, %s67
      %p73 = scmp.eq.s32.totalorder %s16, 0
      %p74 = por %p72, %p73
      %p75 = scmp.ne.s32.totalorder %s64, %s67
      %p76 = scmp.eq.s32.totalorder %s21, 3
      %p77 = por %p75, %p76
      %p78 = scmp.ne.s32.totalorder %s67, %s68
      %p79 = scmp.eq.s32.totalorder %s21, 0
      %p80 = por %p78, %p79
      %p81 = scmp.ne.s32.totalorder %s67, %s68
      %p82 = scmp.eq.s32.totalorder %s22, 3
      %p83 = por %p81, %p82
      %p85 = scmp.ne.s32.totalorder %s68, %s84
      %p86 = scmp.eq.s32.totalorder %s22, 0
      %p87 = por %p85, %p86
      %s88 = ssub.s32 %s24, %s31
      %p89 = scmp.eq.s32.totalorder %s88, 0
      %s91 = sadd.s32 %s90, 1
      %s92 = scalar_select %p89, %s90, %s91
      %p95 = pneg %p89
      %p96 = scmp.eq.s32.totalorder %s16, 3
      %p97 = por %p95, %p96
      %p98 = scmp.ne.s32.totalorder %s90, %s93
      %p99 = scmp.eq.s32.totalorder %s16, 0
      %p100 = por %p98, %p99
      %p101 = scmp.ne.s32.totalorder %s90, %s93
      %p102 = scmp.eq.s32.totalorder %s21, 3
      %p103 = por %p101, %p102
      %p104 = scmp.ne.s32.totalorder %s93, %s94
      %p105 = scmp.eq.s32.totalorder %s21, 0
      %p106 = por %p104, %p105
      %p107 = scmp.ne.s32.totalorder %s93, %s94
      %p108 = scmp.eq.s32.totalorder %s22, 3
      %p109 = por %p107, %p108
      %p111 = scmp.ne.s32.totalorder %s94, %s110
      %p112 = scmp.eq.s32.totalorder %s22, 0
      %p113 = por %p111, %p112
      %s114 = ssub.s32 %s24, %s31
      %p115 = scmp.eq.s32.totalorder %s114, 0
      %s117 = sadd.s32 %s116, 1
      %s118 = scalar_select %p115, %s116, %s117
      %p121 = pneg %p115
      %p122 = scmp.eq.s32.totalorder %s16, 3
      %p123 = por %p121, %p122
      %p124 = scmp.ne.s32.totalorder %s116, %s119
      %p125 = scmp.eq.s32.totalorder %s16, 0
      %p126 = por %p124, %p125
      %p127 = scmp.ne.s32.totalorder %s116, %s119
      %p128 = scmp.eq.s32.totalorder %s21, 3
      %p129 = por %p127, %p128
      %p130 = scmp.ne.s32.totalorder %s119, %s120
      %p131 = scmp.eq.s32.totalorder %s21, 0
      %p132 = por %p130, %p131
      %p133 = scmp.ne.s32.totalorder %s119, %s120
      %p134 = scmp.eq.s32.totalorder %s22, 3
      %p135 = por %p133, %p134
      %p137 = scmp.ne.s32.totalorder %s120, %s136
      %p138 = scmp.eq.s32.totalorder %s22, 0
      %p139 = por %p137, %p138
      %s140 = ssub.s32 %s24, %s31
      %p141 = scmp.eq.s32.totalorder %s140, 0
      %s143 = sadd.s32 %s142, 1
      %s144 = scalar_select %p141, %s142, %s143
      %p147 = pneg %p141
      %p148 = scmp.eq.s32.totalorder %s16, 3
      %p149 = por %p147, %p148
      %p150 = scmp.ne.s32.totalorder %s142, %s145
      %p151 = scmp.eq.s32.totalorder %s16, 0
      %p152 = por %p150, %p151
      %p153 = scmp.ne.s32.totalorder %s142, %s145
      %p154 = scmp.eq.s32.totalorder %s21, 3
      %p155 = por %p153, %p154
      %p156 = scmp.ne.s32.totalorder %s145, %s146
      %p157 = scmp.eq.s32.totalorder %s21, 0
      %p158 = por %p156, %p157
      %p159 = scmp.ne.s32.totalorder %s145, %s146
      %p160 = scmp.eq.s32.totalorder %s22, 3
      %p161 = por %p159, %p160
      %p163 = scmp.ne.s32.totalorder %s146, %s162
      %p164 = scmp.eq.s32.totalorder %s22, 0
      %p165 = por %p163, %p164
      %s166 = ssub.s32 %s24, %s31
      %p167 = scmp.eq.s32.totalorder %s166, 0
      %s169 = sadd.s32 %s168, 1
      %s170 = scalar_select %p167, %s168, %s169
      %p173 = pneg %p167
      %p174 = scmp.eq.s32.totalorder %s16, 3
      %p175 = por %p173, %p174
      %p176 = scmp.ne.s32.totalorder %s168, %s171
      %p177 = scmp.eq.s32.totalorder %s16, 0
      %p178 = por %p176, %p177
      %p179 = scmp.ne.s32.totalorder %s168, %s171
      %p180 = scmp.eq.s32.totalorder %s21, 3
      %p181 = por %p179, %p180
      %p182 = scmp.ne.s32.totalorder %s171, %s172
      %p183 = scmp.eq.s32.totalorder %s21, 0
      %p184 = por %p182, %p183
      %p185 = scmp.ne.s32.totalorder %s171, %s172
      %p186 = scmp.eq.s32.totalorder %s22, 3
      %p187 = por %p185, %p186
      %p189 = scmp.ne.s32.totalorder %s172, %s188
      %p190 = scmp.eq.s32.totalorder %s22, 0
      %p191 = por %p189, %p190
      %s193 = sadd.s32 %s192, 1
      %p196 = scmp.eq.s32.totalorder %s16, 3
      %p197 = scmp.ne.s32.totalorder %s192, %s194
      %p198 = scmp.eq.s32.totalorder %s16, 0
      %p199 = por %p197, %p198
      %p200 = scmp.ne.s32.totalorder %s192, %s194
      %p201 = scmp.eq.s32.totalorder %s21, 3
      %p202 = por %p200, %p201
      %p203 = scmp.ne.s32.totalorder %s194, %s195
      %p204 = scmp.eq.s32.totalorder %s21, 0
      %p205 = por %p203, %p204
      %p206 = scmp.ne.s32.totalorder %s194, %s195
      %p207 = scmp.eq.s32.totalorder %s22, 3
      %p208 = por %p206, %p207
      %p210 = scmp.ne.s32.totalorder %s195, %s209
      %p211 = scmp.eq.s32.totalorder %s22, 0
      %p212 = por %p210, %p211
      %s213 = ssub.s32 %s23, %s35
      %p214 = scmp.eq.s32.totalorder %s213, 0
      %s216 = sadd.s32 %s215, 1
      %s217 = scalar_select %p214, %s215, %s216
      %p220 = pneg %p214
      %p221 = scmp.eq.s32.totalorder %s16, 3
      %p222 = por %p220, %p221
      %p223 = scmp.ne.s32.totalorder %s215, %s218
      %p224 = scmp.eq.s32.totalorder %s16, 0
      %p225 = por %p223, %p224
      %p226 = scmp.ne.s32.totalorder %s215, %s218
      %p227 = scmp.eq.s32.totalorder %s21, 3
      %p228 = por %p226, %p227
      %p229 = scmp.ne.s32.totalorder %s218, %s219
      %p230 = scmp.eq.s32.totalorder %s21, 0
      %p231 = por %p229, %p230
      %p232 = scmp.ne.s32.totalorder %s218, %s219
      %p233 = scmp.eq.s32.totalorder %s22, 3
      %p234 = por %p232, %p233
      %p236 = scmp.ne.s32.totalorder %s219, %s235
      %p237 = scmp.eq.s32.totalorder %s22, 0
      %p238 = por %p236, %p237
      %p239 = scmp.le.s32.totalorder 1, %s16
      %p240 = scmp.lt.s32.totalorder %s16, 5
      %p241 = pnand %p239, %p240
      %p242 = pneg %p241
      // Predicated region
      $region9: #{tpu_custom_call.1} parent=5 // pred_check
        _
      $region10: #{tpu_custom_call.1} parent=5 // pred_check_branch
        %244 = sbr.rel (%p241) target = $region12
      $region11: #{tpu_custom_call.1} parent=5 // pred_region
        %s245 = ssub.s32 %s16, 1
        // Predicated region
        $region13: #{tpu_custom_call.1} parent=11 // pred_check
          %p246 = pneg %p205
        $region14: #{tpu_custom_call.1} parent=11 // pred_check_branch
          %248 = sbr.rel (%p246) target = $region16
        $region15: #{tpu_custom_call.1} parent=11 // pred_region
          _
        $region16: #{tpu_custom_call.1} parent=11 // pred_fallthru
          _
      $region12: #{tpu_custom_call.1} parent=5 // pred_fallthru
        _
      %p249 = scmp.lt.s32.totalorder %s16, 4
      // Predicated region
      $region17: #{tpu_custom_call.1} parent=5 // pred_check
        %p250 = pneg %p249
      $region18: #{tpu_custom_call.1} parent=5 // pred_check_branch
        %252 = sbr.rel (%p250) target = $region20
      $region19: #{tpu_custom_call.1} parent=5 // pred_region
        // Predicated region
        $region21: #{tpu_custom_call.1} parent=19 // pred_check
          %p253 = pneg %p48
        $region22: #{tpu_custom_call.1} parent=19 // pred_check_branch
          %255 = sbr.rel (%p253) target = $region24
        $region23: #{tpu_custom_call.1} parent=19 // pred_region
          %p256 = scmp.lt.s32.totalorder %s23, 1
          %s257 = scalar_select %p256, %s23, 1
          %s258 = smul.addr %s257, 8
          %s259 = scalar_lea.vmem %s0, %s258
        $region24: #{tpu_custom_call.1} parent=19 // pred_fallthru
          _
        // Predicated region
        $region25: #{tpu_custom_call.1} parent=19 // pred_check
          %p260 = pneg %p74
        $region26: #{tpu_custom_call.1} parent=19 // pred_check_branch
          %262 = sbr.rel (%p260) target = $region28
        $region27: #{tpu_custom_call.1} parent=19 // pred_region
          %p263 = scmp.lt.s32.totalorder %s23, 1
          %s264 = scalar_select %p263, %s23, 1
          %s265 = smul.addr %s264, 8
          %s266 = scalar_lea.vmem %s1, %s265
        $region28: #{tpu_custom_call.1} parent=19 // pred_fallthru
          _
        // Predicated region
        $region29: #{tpu_custom_call.1} parent=19 // pred_check
          %p267 = pneg %p100
        $region30: #{tpu_custom_call.1} parent=19 // pred_check_branch
          %269 = sbr.rel (%p267) target = $region32
        $region31: #{tpu_custom_call.1} parent=19 // pred_region
          %p270 = scmp.lt.s32.totalorder %s24, 1
          %s271 = scalar_select %p270, %s24, 1
          %s272 = smul.addr %s271, 4
          %s273 = smul.addr %s272, 4
          %s274 = scalar_lea.vmem %s2, %s273
        $region32: #{tpu_custom_call.1} parent=19 // pred_fallthru
          _
        // Predicated region
        $region33: #{tpu_custom_call.1} parent=19 // pred_check
          %p275 = pneg %p126
        $region34: #{tpu_custom_call.1} parent=19 // pred_check_branch
          %277 = sbr.rel (%p275) target = $region36
        $region35: #{tpu_custom_call.1} parent=19 // pred_region
          %p278 = scmp.lt.s32.totalorder %s24, 1
          %s279 = scalar_select %p278, %s24, 1
          %s280 = smul.addr %s279, 4
          %s281 = smul.addr %s280, 4
          %s282 = scalar_lea.vmem %s3, %s281
        $region36: #{tpu_custom_call.1} parent=19 // pred_fallthru
          _
        // Predicated region
        $region37: #{tpu_custom_call.1} parent=19 // pred_check
          %p283 = pneg %p152
        $region38: #{tpu_custom_call.1} parent=19 // pred_check_branch
          %285 = sbr.rel (%p283) target = $region40
        $region39: #{tpu_custom_call.1} parent=19 // pred_region
          %p286 = scmp.lt.s32.totalorder %s24, 1
          %s287 = scalar_select %p286, %s24, 1
          %s288 = smul.addr %s287, 4
          %s289 = smul.addr %s288, 4
          %s290 = scalar_lea.vmem %s4, %s289
        $region40: #{tpu_custom_call.1} parent=19 // pred_fallthru
          _
        // Predicated region
        $region41: #{tpu_custom_call.1} parent=19 // pred_check
          %p291 = pneg %p178
        $region42: #{tpu_custom_call.1} parent=19 // pred_check_branch
          %293 = sbr.rel (%p291) target = $region44
        $region43: #{tpu_custom_call.1} parent=19 // pred_region
          %p294 = scmp.lt.s32.totalorder %s24, 1
          %s295 = scalar_select %p294, %s24, 1
          %s296 = smul.addr %s295, 2
          %s297 = smul.addr %s296, 4
          %s298 = scalar_lea.vmem %s5, %s297
        $region44: #{tpu_custom_call.1} parent=19 // pred_fallthru
          _
      $region20: #{tpu_custom_call.1} parent=5 // pred_fallthru
        _
      %p299 = scmp.le.s32.totalorder 1, %s16
      %p300 = scmp.lt.s32.totalorder %s16, 5
      %p301 = pnand %p299, %p300
      %p302 = pneg %p301
      // Predicated region
      $region45: #{tpu_custom_call.1} parent=5 // pred_check
        _
      $region46: #{tpu_custom_call.1} parent=5 // pred_check_branch
        %304 = sbr.rel (%p301) target = $region48
      $region47: #{tpu_custom_call.1} parent=5 // pred_region
        %s305 = ssub.s32 %s16, 1
        %p306 = scmp.lt.s32.totalorder %s25, 1
        %s307 = scalar_select %p306, %s25, 1
        %s308 = smul.addr %s307, 8
        %s309 = scalar_lea.vmem %s0, %s308
        %p310 = pneg %p54
        %p311 = pneg %p51
        %p312 = scmp.lt.s32.totalorder %s25, 1
        %s313 = scalar_select %p312, %s25, 1
        %s314 = smul.addr %s313, 8
        %s315 = scalar_lea.vmem %s1, %s314
        %p316 = pneg %p80
        %p317 = pneg %p77
        %p318 = scmp.lt.s32.totalorder %s26, 1
        %s319 = scalar_select %p318, %s26, 1
        %s320 = smul.addr %s319, 4
        %s321 = smul.addr %s320, 4
        %s322 = scalar_lea.vmem %s2, %s321
        %p323 = pneg %p106
        %p324 = pneg %p103
        %p325 = scmp.lt.s32.totalorder %s26, 1
        %s326 = scalar_select %p325, %s26, 1
        %s327 = smul.addr %s326, 4
        %s328 = smul.addr %s327, 4
        %s329 = scalar_lea.vmem %s3, %s328
        %p330 = pneg %p132
        %p331 = pneg %p129
        %p332 = scmp.lt.s32.totalorder %s26, 1
        %s333 = scalar_select %p332, %s26, 1
        %s334 = smul.addr %s333, 4
        %s335 = smul.addr %s334, 4
        %s336 = scalar_lea.vmem %s4, %s335
        %p337 = pneg %p158
        %p338 = pneg %p155
        %p339 = scmp.lt.s32.totalorder %s26, 1
        %s340 = scalar_select %p339, %s26, 1
        %s341 = smul.addr %s340, 2
        %s342 = smul.addr %s341, 4
        %s343 = scalar_lea.vmem %s5, %s342
        %p344 = pneg %p184
        %p345 = pneg %p181
        %p346 = pneg %p205
        %p347 = pneg %p202
        %p348 = pneg %p231
        %p349 = pneg %p228
        %s350 = sand.u32 %s218, 1
        %s351 = scalar_lea.sflag [#allocation4], %s350
        %s352 = sand.u32 %s218, 1
        %s353 = smul.addr %s352, 8
        %s354 = scalar_lea.vmem [#allocation3], %s353
        %p355 = scmp.lt.s32.totalorder %s25, 1
        %s356 = scalar_select %p355, %s25, 1
        %s357 = smul.addr %s356, 8
        %s358 = scalar_lea.vmem %s0, %s357
        %p359 = scmp.lt.s32.totalorder %s25, 1
        %s360 = scalar_select %p359, %s25, 1
        %s361 = smul.addr %s360, 8
        %s362 = scalar_lea.vmem %s1, %s361
        %p363 = scmp.lt.s32.totalorder %s26, 1
        %s364 = scalar_select %p363, %s26, 1
        %s365 = smul.addr %s364, 4
        %s366 = smul.addr %s365, 4
        %s367 = scalar_lea.vmem %s2, %s366
        %p368 = scmp.lt.s32.totalorder %s26, 1
        %s369 = scalar_select %p368, %s26, 1
        %s370 = smul.addr %s369, 4
        %s371 = smul.addr %s370, 4
        %s372 = scalar_lea.vmem %s3, %s371
        %p373 = scmp.lt.s32.totalorder %s26, 1
        %s374 = scalar_select %p373, %s26, 1
        %s375 = smul.addr %s374, 4
        %s376 = smul.addr %s375, 4
        %s377 = scalar_lea.vmem %s4, %s376
        %p378 = scmp.lt.s32.totalorder %s26, 1
        %s379 = scalar_select %p378, %s26, 1
        %s380 = smul.addr %s379, 2
        %s381 = smul.addr %s380, 4
        %s382 = scalar_lea.vmem %s5, %s381
        %p384 = scmp.eq.s32.totalorder %s26, 0
        // Predicated region
        $region49: #{tpu_custom_call.1} parent=47 // pred_check
          %p385 = pneg %p384
        $region50: #{tpu_custom_call.1} parent=47 // pred_check_branch
          %387 = sbr.rel (%p385) target = $region52
        $region51: #{tpu_custom_call.1} parent=47 // pred_region
          %vm388 = vcmask 261120
          %389 = vst.msk [vmem:[#allocation2] sm:$0xff] %vm388, 0.0
        $region52: #{tpu_custom_call.1} parent=47 // pred_fallthru
          _
        %v390 = vld [vmem:[%s358] sm:$0xff]
        %v391 = vpack.c.bf16 %v390, %v390
        %v392 = vld [vmem:[%s362] sm:$0xff]
        %v393 = vpack.c.bf16 %v392, %v392
        %v394 = vld [vmem:[%s367] sm:$0xf]
        %v395 = vld [vmem:[%s367 + $0x4] sm:$0xf]
        %v396 = vld [vmem:[%s367 + $0x8] sm:$0xf]
        %v397 = vld [vmem:[%s367 + $0xc] sm:$0xf]
        %v402 = vunpack.c.l.b16 %v394
        %v403 = vunpack.c.l.b16 %v395
        %v404 = vunpack.c.l.b16 %v396
        %v405 = vunpack.c.l.b16 %v397
        %v406 = vpack.c.b16 %v403, %v402
        %v407 = vpack.c.b16 %v405, %v404
        %vm410 = vcmask 261120
        %v412 = vsel %vm410, %v391, 0
        %414 = vmatprep.subr.bf16.mxu0 0
        %415 = vmatpush1.bf16.msra.mxu0 %v406
        %416 = vmatprep.subr.bf16.mxu0 0
        %417 = vmatpush1.bf16.msra.mxu0 %v407
        %418 = vmatprep.subr.bf16.mxu0 0
        %419 = vmatpush1.bf16.msra.mxu0 0
        %420 = vmatprep.subr.bf16.mxu0 0
        %421 = vmatpush1.bf16.msra.mxu0 0
        %422 = vmatprep.subr.bf16.mxu0 0
        %423 = vmatpush1.bf16.msra.mxu0 0
        %424 = vmatprep.subr.bf16.mxu0 0
        %425 = vmatpush1.bf16.msra.mxu0 0
        %426 = vmatprep.subr.bf16.mxu0 0
        %427 = vmatpush1.bf16.msra.mxu0 0
        %428 = vmatprep.subr.bf16.mxu0 0
        %429 = vmatpush1.bf16.msra.mxu0 0
        %430 = vmatprep.subr.bf16.mxu0 0
        %431 = vmatpush1.bf16.msra.mxu0 0
        %432 = vmatprep.subr.bf16.mxu0 0
        %433 = vmatpush1.bf16.msra.mxu0 0
        %434 = vmatprep.subr.bf16.mxu0 0
        %435 = vmatpush1.bf16.msra.mxu0 0
        %436 = vmatprep.subr.bf16.mxu0 0
        %437 = vmatpush1.bf16.msra.mxu0 0
        %438 = vmatprep.subr.bf16.mxu0 0
        %439 = vmatpush1.bf16.msra.mxu0 0
        %440 = vmatprep.subr.bf16.mxu0 0
        %441 = vmatpush1.bf16.msra.mxu0 0
        %442 = vmatprep.subr.bf16.mxu0 0
        %443 = vmatpush1.bf16.msra.mxu0 0
        %444 = vmatprep.subr.bf16.mxu0 0
        %445 = vmatpush1.bf16.msra.mxu0 0
        %446 = vmatprep.mubr.bf16.mxu0 0
        %447 = vmatmul.mubr.bf16.gmra.mrb[0].mxu0 %v412
        %v448 = vpop.f32.mrb[0].mxu0
        %v449 = vadd.f32 0.0, %v448
        %v450 = vpop.f32.mrb[0].mxu0
        %v451 = vpop.f32.mrb[0].mxu0
        %v452 = vpop.f32.mrb[0].mxu0
        %453 = vdwg.mxu0
        %v454 = vld [vmem:[%s372] sm:$0xf]
        %v455 = vld [vmem:[%s372 + $0x4] sm:$0xf]
        %v456 = vld [vmem:[%s372 + $0x8] sm:$0xf]
        %v457 = vld [vmem:[%s372 + $0xc] sm:$0xf]
        %v462 = vunpack.c.l.b16 %v454
        %v463 = vunpack.c.l.b16 %v455
        %v464 = vunpack.c.l.b16 %v456
        %v465 = vunpack.c.l.b16 %v457
        %v466 = vpack.c.b16 %v463, %v462
        %v467 = vpack.c.b16 %v465, %v464
        %470 = vmatprep.subr.bf16.mxu0 0
        %471 = vmatpush1.bf16.msra.mxu0 %v466
        %472 = vmatprep.subr.bf16.mxu0 0
        %473 = vmatpush1.bf16.msra.mxu0 %v467
        %474 = vmatprep.subr.bf16.mxu0 0
        %475 = vmatpush1.bf16.msra.mxu0 0
        %476 = vmatprep.subr.bf16.mxu0 0
        %477 = vmatpush1.bf16.msra.mxu0 0
        %478 = vmatprep.subr.bf16.mxu0 0
        %479 = vmatpush1.bf16.msra.mxu0 0
        %480 = vmatprep.subr.bf16.mxu0 0
        %481 = vmatpush1.bf16.msra.mxu0 0
        %482 = vmatprep.subr.bf16.mxu0 0
        %483 = vmatpush1.bf16.msra.mxu0 0
        %484 = vmatprep.subr.bf16.mxu0 0
        %485 = vmatpush1.bf16.msra.mxu0 0
        %486 = vmatprep.subr.bf16.mxu0 0
        %487 = vmatpush1.bf16.msra.mxu0 0
        %488 = vmatprep.subr.bf16.mxu0 0
        %489 = vmatpush1.bf16.msra.mxu0 0
        %490 = vmatprep.subr.bf16.mxu0 0
        %491 = vmatpush1.bf16.msra.mxu0 0
        %492 = vmatprep.subr.bf16.mxu0 0
        %493 = vmatpush1.bf16.msra.mxu0 0
        %494 = vmatprep.subr.bf16.mxu0 0
        %495 = vmatpush1.bf16.msra.mxu0 0
        %496 = vmatprep.subr.bf16.mxu0 0
        %497 = vmatpush1.bf16.msra.mxu0 0
        %498 = vmatprep.subr.bf16.mxu0 0
        %499 = vmatpush1.bf16.msra.mxu0 0
        %500 = vmatprep.subr.bf16.mxu0 0
        %501 = vmatpush1.bf16.msra.mxu0 0
        %502 = vmatprep.mubr.bf16.mxu0 0
        %503 = vmatmul.mubr.bf16.gmra.mrb[0].mxu0 %v412
        %v504 = vpop.f32.mrb[0].mxu0
        %v505 = vadd.f32 0.0, %v504
        %v506 = vpop.f32.mrb[0].mxu0
        %v507 = vpop.f32.mrb[0].mxu0
        %v508 = vpop.f32.mrb[0].mxu0
        %509 = vdwg.mxu0
        %v510 = vld [vmem:[%s377] sm:$0xf]
        %v511 = vld [vmem:[%s377 + $0x4] sm:$0xf]
        %v512 = vld [vmem:[%s377 + $0x8] sm:$0xf]
        %v513 = vld [vmem:[%s377 + $0xc] sm:$0xf]
        %v518 = vunpack.c.l.b16 %v510
        %v519 = vunpack.c.l.b16 %v511
        %v520 = vunpack.c.l.b16 %v512
        %v521 = vunpack.c.l.b16 %v513
        %v522 = vpack.c.b16 %v519, %v518
        %v523 = vpack.c.b16 %v521, %v520
        %v527 = vsel %vm410, %v393, 0
        %529 = vmatprep.subr.bf16.mxu0 0
        %530 = vmatpush1.bf16.msra.mxu0 %v522
        %531 = vmatprep.subr.bf16.mxu0 0
        %532 = vmatpush1.bf16.msra.mxu0 %v523
        %533 = vmatprep.subr.bf16.mxu0 0
        %534 = vmatpush1.bf16.msra.mxu0 0
        %535 = vmatprep.subr.bf16.mxu0 0
        %536 = vmatpush1.bf16.msra.mxu0 0
        %537 = vmatprep.subr.bf16.mxu0 0
        %538 = vmatpush1.bf16.msra.mxu0 0
        %539 = vmatprep.subr.bf16.mxu0 0
        %540 = vmatpush1.bf16.msra.mxu0 0
        %541 = vmatprep.subr.bf16.mxu0 0
        %542 = vmatpush1.bf16.msra.mxu0 0
        %543 = vmatprep.subr.bf16.mxu0 0
        %544 = vmatpush1.bf16.msra.mxu0 0
        %545 = vmatprep.subr.bf16.mxu0 0
        %546 = vmatpush1.bf16.msra.mxu0 0
        %547 = vmatprep.subr.bf16.mxu0 0
        %548 = vmatpush1.bf16.msra.mxu0 0
        %549 = vmatprep.subr.bf16.mxu0 0
        %550 = vmatpush1.bf16.msra.mxu0 0
        %551 = vmatprep.subr.bf16.mxu0 0
        %552 = vmatpush1.bf16.msra.mxu0 0
        %553 = vmatprep.subr.bf16.mxu0 0
        %554 = vmatpush1.bf16.msra.mxu0 0
        %555 = vmatprep.subr.bf16.mxu0 0
        %556 = vmatpush1.bf16.msra.mxu0 0
        %557 = vmatprep.subr.bf16.mxu0 0
        %558 = vmatpush1.bf16.msra.mxu0 0
        %559 = vmatprep.subr.bf16.mxu0 0
        %560 = vmatpush1.bf16.msra.mxu0 0
        %561 = vmatprep.mubr.bf16.mxu0 0
        %562 = vmatmul.mubr.bf16.gmra.mrb[0].mxu0 %v527
        %v563 = vpop.f32.mrb[0].mxu0
        %v564 = vadd.f32 0.0, %v563
        %v565 = vpop.f32.mrb[0].mxu0
        %v566 = vpop.f32.mrb[0].mxu0
        %v567 = vpop.f32.mrb[0].mxu0
        %568 = vdwg.mxu0
        %v569 = vpack.c.bf16 %v564, %v564
        %v570 = vpack.c.bf16 %v449, %v449
        %v571 = vpack.c.bf16 %v505, %v505
        %vm572 = vcmask 130048
        %v574 = vsel %vm572, %v569, 0
        %v577 = vsel %vm572, %v570, 0
        %579 = vmatprep.subr.bf16.mxu0 0
        %580 = vmatpush1.bf16.xpose.msra.mxu0 %v577
        %581 = vmatprep.subr.bf16.mxu0 0
        %582 = vmatpush1.bf16.xpose.msra.mxu0 0
        %583 = vmatprep.subr.bf16.mxu0 0
        %584 = vmatpush1.bf16.xpose.msra.mxu0 0
        %585 = vmatprep.subr.bf16.mxu0 0
        %586 = vmatpush1.bf16.xpose.msra.mxu0 0
        %587 = vmatprep.subr.bf16.mxu0 0
        %588 = vmatpush1.bf16.xpose.msra.mxu0 0
        %589 = vmatprep.subr.bf16.mxu0 0
        %590 = vmatpush1.bf16.xpose.msra.mxu0 0
        %591 = vmatprep.subr.bf16.mxu0 0
        %592 = vmatpush1.bf16.xpose.msra.mxu0 0
        %593 = vmatprep.subr.bf16.mxu0 0
        %594 = vmatpush1.bf16.xpose.msra.mxu0 0
        %595 = vmatprep.subr.bf16.mxu0 0
        %596 = vmatpush1.bf16.xpose.msra.mxu0 0
        %597 = vmatprep.subr.bf16.mxu0 0
        %598 = vmatpush1.bf16.xpose.msra.mxu0 0
        %599 = vmatprep.subr.bf16.mxu0 0
        %600 = vmatpush1.bf16.xpose.msra.mxu0 0
        %601 = vmatprep.subr.bf16.mxu0 0
        %602 = vmatpush1.bf16.xpose.msra.mxu0 0
        %603 = vmatprep.subr.bf16.mxu0 0
        %604 = vmatpush1.bf16.xpose.msra.mxu0 0
        %605 = vmatprep.subr.bf16.mxu0 0
        %606 = vmatpush1.bf16.xpose.msra.mxu0 0
        %607 = vmatprep.subr.bf16.mxu0 0
        %608 = vmatpush1.bf16.xpose.msra.mxu0 0
        %609 = vmatprep.subr.bf16.mxu0 0
        %610 = vmatpush1.bf16.xpose.msra.mxu0 0
        %611 = vmatprep.mubr.bf16.mxu0 0
        %612 = vmatmul.mubr.bf16.gmra.mrb[0].mxu0 %v574
        %v613 = vpop.f32.mrb[0].mxu0
        %v614 = vadd.f32 0.0, %v613
        %v615 = vpop.f32.mrb[0].mxu0
        %v616 = vpop.f32.mrb[0].mxu0
        %v617 = vpop.f32.mrb[0].mxu0
        %618 = vdwg.mxu0
        %vm619 = vcmask 64512
        %v620 = vsel %vm619, %v614, -inf
        %621 = vmax.xlane.f32.xlu0 %v620
        %v622 = vpop.xlane.xlu0 %621
        %v623 = vsub.f32 %v614, %v622
        %v624 = vmul.f32 %v623, 1.442695
        %v625 = vpow.pop %v624
        %v626 = vsel %vm619, %v625, 0.0
        %627 = vadd.xlane.f32.xlu0 %v626
        %v628 = vpop.xlane.xlu0 %627
        %v629 = vrcp.pop %v628
        %v630 = vmul.f32 %v625, %v629
        %v631 = vpack.c.bf16 %v630, %v630
        %v633 = vsel %vm619, %v631, 0
        %vm635 = vcmask 1043456
        %v637 = vsel %vm635, %v571, 0
        %639 = vmatprep.subr.bf16.mxu0 0
        %640 = vmatpush1.bf16.msra.mxu0 %v637
        %641 = vmatprep.subr.bf16.mxu0 0
        %642 = vmatpush1.bf16.msra.mxu0 0
        %643 = vmatprep.subr.bf16.mxu0 0
        %644 = vmatpush1.bf16.msra.mxu0 0
        %645 = vmatprep.subr.bf16.mxu0 0
        %646 = vmatpush1.bf16.msra.mxu0 0
        %647 = vmatprep.subr.bf16.mxu0 0
        %648 = vmatpush1.bf16.msra.mxu0 0
        %649 = vmatprep.subr.bf16.mxu0 0
        %650 = vmatpush1.bf16.msra.mxu0 0
        %651 = vmatprep.subr.bf16.mxu0 0
        %652 = vmatpush1.bf16.msra.mxu0 0
        %653 = vmatprep.subr.bf16.mxu0 0
        %654 = vmatpush1.bf16.msra.mxu0 0
        %655 = vmatprep.subr.bf16.mxu0 0
        %656 = vmatpush1.bf16.msra.mxu0 0
        %657 = vmatprep.subr.bf16.mxu0 0
        %658 = vmatpush1.bf16.msra.mxu0 0
        %659 = vmatprep.subr.bf16.mxu0 0
        %660 = vmatpush1.bf16.msra.mxu0 0
        %661 = vmatprep.subr.bf16.mxu0 0
        %662 = vmatpush1.bf16.msra.mxu0 0
        %663 = vmatprep.subr.bf16.mxu0 0
        %664 = vmatpush1.bf16.msra.mxu0 0
        %665 = vmatprep.subr.bf16.mxu0 0
        %666 = vmatpush1.bf16.msra.mxu0 0
        %667 = vmatprep.subr.bf16.mxu0 0
        %668 = vmatpush1.bf16.msra.mxu0 0
        %669 = vmatprep.subr.bf16.mxu0 0
        %670 = vmatpush1.bf16.msra.mxu0 0
        %671 = vmatprep.mubr.bf16.mxu0 0
        %672 = vmatmul.mubr.bf16.gmra.mrb[0].mxu0 %v633
        %v673 = vpop.f32.mrb[0].mxu0
        %v674 = vadd.f32 0.0, %v673
        %v675 = vpop.f32.mrb[0].mxu0
        %v676 = vpop.f32.mrb[0].mxu0
        %v677 = vpop.f32.mrb[0].mxu0
        %678 = vdwg.mxu0
        %v679 = vld [vmem:[#allocation2] sm:$0xff]
        %v680 = vpack.c.bf16 %v674, %v674
        %v681 = vld [vmem:[%s382] sm:$0xf]
        %v682 = vld [vmem:[%s382 + $0x4] sm:$0xf]
        %v685 = vunpack.c.l.b16 %v681
        %v686 = vunpack.c.l.b16 %v682
        %v687 = vpack.c.b16 %v686, %v685
        %v690 = vsel %vm572, %v680, 0
        %692 = vmatprep.subr.bf16.mxu0 0
        %693 = vmatpush1.bf16.msra.mxu0 %v687
        %694 = vmatprep.subr.bf16.mxu0 0
        %695 = vmatpush1.bf16.msra.mxu0 0
        %696 = vmatprep.subr.bf16.mxu0 0
        %697 = vmatpush1.bf16.msra.mxu0 0
        %698 = vmatprep.subr.bf16.mxu0 0
        %699 = vmatpush1.bf16.msra.mxu0 0
        %700 = vmatprep.subr.bf16.mxu0 0
        %701 = vmatpush1.bf16.msra.mxu0 0
        %702 = vmatprep.subr.bf16.mxu0 0
        %703 = vmatpush1.bf16.msra.mxu0 0
        %704 = vmatprep.subr.bf16.mxu0 0
        %705 = vmatpush1.bf16.msra.mxu0 0
        %706 = vmatprep.subr.bf16.mxu0 0
        %707 = vmatpush1.bf16.msra.mxu0 0
        %708 = vmatprep.subr.bf16.mxu0 0
        %709 = vmatpush1.bf16.msra.mxu0 0
        %710 = vmatprep.subr.bf16.mxu0 0
        %711 = vmatpush1.bf16.msra.mxu0 0
        %712 = vmatprep.subr.bf16.mxu0 0
        %713 = vmatpush1.bf16.msra.mxu0 0
        %714 = vmatprep.subr.bf16.mxu0 0
        %715 = vmatpush1.bf16.msra.mxu0 0
        %716 = vmatprep.subr.bf16.mxu0 0
        %717 = vmatpush1.bf16.msra.mxu0 0
        %718 = vmatprep.subr.bf16.mxu0 0
        %719 = vmatpush1.bf16.msra.mxu0 0
        %720 = vmatprep.subr.bf16.mxu0 0
        %721 = vmatpush1.bf16.msra.mxu0 0
        %722 = vmatprep.subr.bf16.mxu0 0
        %723 = vmatpush1.bf16.msra.mxu0 0
        %724 = vmatprep.mubr.bf16.mxu0 0
        %725 = vmatmul.mubr.bf16.gmra.mrb[0].mxu0 %v690
        %v726 = vpop.f32.mrb[0].mxu0
        %v727 = vadd.f32 0.0, %v726
        %v728 = vpop.f32.mrb[0].mxu0
        %v729 = vpop.f32.mrb[0].mxu0
        %v730 = vpop.f32.mrb[0].mxu0
        %731 = vdwg.mxu0
        %v732 = vadd.f32 %v679, %v727
        %733 = vst.msk [vmem:[#allocation2] sm:$0xff] %vm410, %v732
        %p734 = scmp.eq.s32.totalorder %s26, 1
        // Predicated region
        $region53: #{tpu_custom_call.1} parent=47 // pred_check
          %p735 = pneg %p734
        $region54: #{tpu_custom_call.1} parent=47 // pred_check_branch
          %737 = sbr.rel (%p735) target = $region56
        $region55: #{tpu_custom_call.1} parent=47 // pred_region
          %v738 = vld [vmem:[#allocation2] sm:$0xff]
          %v739 = vld [vmem:[%s6] sm:$0x1]
          %v741 = vlaneseq
          %v742 = vshrl.u32 %v741, 7
          %v743 = vsub.s32 0, %v742
          %v744 = vrot.slane %v739, %v743
          %v746 = vadd.f32 %v738, %v744
          %747 = vst.msk [vmem:[%s354] sm:$0xff] %vm410, %v746
        $region56: #{tpu_custom_call.1} parent=47 // pred_fallthru
          _
        %s748 = sand.u32 %s218, 1
        %s749 = scalar_lea.sflag [#allocation4], %s748
        %s750 = sand.u32 %s218, 1
        %s751 = smul.addr %s750, 8
        %s752 = scalar_lea.vmem [#allocation3], %s751
        // Predicated region
        $region57: #{tpu_custom_call.1} parent=47 // pred_check
          %p753 = pneg %p228
        $region58: #{tpu_custom_call.1} parent=47 // pred_check_branch
          %755 = sbr.rel (%p753) target = $region60
        $region59: #{tpu_custom_call.1} parent=47 // pred_region
          %s757 = ssub.s32 128, 128
          %758 = vsyncadd %s749, %s757
          %s759 = smul.addr %s25, 128
          %s760 = scalar_lea.hbm %s7, %s759
          %s762 = sshll.u32 %s752, 4
          %s763 = int_to_ptr.vmem [resolvable:$true] %s762
          %765 = dma.vmem_to_hbm [thread:$0]  %s763, 128, %s760, %s749
        $region60: #{tpu_custom_call.1} parent=47 // pred_fallthru
          _
      $region48: #{tpu_custom_call.1} parent=5 // pred_fallthru
        _
      %p766 = scmp.le.s32.totalorder 2, %s16
      // Predicated region
      $region61: #{tpu_custom_call.1} parent=5 // pred_check
        %p767 = pneg %p766
      $region62: #{tpu_custom_call.1} parent=5 // pred_check_branch
        %769 = sbr.rel (%p767) target = $region64
      $region63: #{tpu_custom_call.1} parent=5 // pred_region
        %s770 = ssub.s32 %s16, 2
        // Predicated region
        $region65: #{tpu_custom_call.1} parent=63 // pred_check
          %p771 = pneg %p234
        $region66: #{tpu_custom_call.1} parent=63 // pred_check_branch
          %773 = sbr.rel (%p771) target = $region68
        $region67: #{tpu_custom_call.1} parent=63 // pred_region
          %s774 = sand.u32 %s219, 1
          %s775 = scalar_lea.sflag [#allocation4], %s774
          %s776 = sand.u32 %s219, 1
          %s777 = smul.addr %s776, 8
          %s778 = scalar_lea.vmem [#allocation3], %s777
          %779 = dma.done %s775, 128
        $region68: #{tpu_custom_call.1} parent=63 // pred_fallthru
          _
      $region64: #{tpu_custom_call.1} parent=5 // pred_fallthru
        _
    $region6: #{tpu_custom_call.1} parent=1 // loop_footer
      %s20 = sadd.s32 1, %s16
    $region7: #{tpu_custom_call.1} parent=1 // loop_footer_branch
      %15 = sbr.rel target = $region3
    $region8: #{tpu_custom_call.1} parent=1 // loop_exit
      _
    %780 = vsyncpa [#allocation4], 1
    %s781 = scalar_lea.sflag [#allocation4], 1
    %782 = vsyncpa %s781, 1

</llo_original>
